<compile_context>
chip_gen: v7x
topology: tpu7x:2x2x1
jax: 0.10.0
libtpu: 0.0.40
codegen_flags: <defaults>
</compile_context>

<pallas_src>
import functools

import numpy as np
import jax
import jax.numpy as jnp
from jax import lax
from jax.experimental import pallas as pl
from jax.experimental.pallas import tpu as pltpu

EPS = 1e-5


def basic_block_kernel(x_ref, rhs1_ref, rhs2_ref, pp_ref, out_ref, *,
                       n_img, height, width, cout):
    # x_ref:    (N*H, W*Cin)            bf16  lane-packed rows
    # rhs1_ref: (W*Cin,  4*W*Cout)      bf16  [conv1 top | center | bottom | 1x1 skip]
    # rhs2_ref: (W*Cout, 3*W*Cout)      bf16  [conv2 top | center | bottom]
    # pp_ref:   (8, W*Cout)             f32   rows: bs, g1, be1, g2, be2, 0, 0, 0
    # out_ref:  (N*H, W*Cout)           bf16  lane-dense output
    NH, _ = x_ref.shape
    WCout = out_ref.shape[-1]
    inv_n = 1.0 / float(NH * width)

    # Row-within-image index for the per-image top/bottom boundary masks.
    if height & (height - 1) == 0:
        row = lax.broadcasted_iota(jnp.int32, (NH, WCout), 0)
        h_idx = jnp.bitwise_and(row, height - 1)
    else:
        h_idx = lax.broadcasted_iota(
            jnp.int32, (n_img, height, WCout), 1).reshape(NH, WCout)
    not_first = h_idx != 0            # dy=0 tap invalid at h == 0
    not_last = h_idx != height - 1    # dy=2 tap invalid at h == H-1

    def combine_taps(slabs):
        # slabs: (NH, 3*WCout) f32 from the unshifted matmul; fold the dy row
        # shifts back in with sublane rolls (XLU) + boundary masks.  The roll
        # wrap-around rows are exactly the masked ones, so cross-image
        # contamination is killed by the same mask as the zero padding.
        top = slabs[:, 0:WCout]                  # needs input row h-1
        ctr = slabs[:, WCout:2 * WCout]          # input row h
        bot = slabs[:, 2 * WCout:3 * WCout]      # needs input row h+1
        acc = ctr
        acc = acc + jnp.where(not_first, pltpu.roll(top, shift=1, axis=0), 0.0)
        acc = acc + jnp.where(not_last,
                              pltpu.roll(bot, shift=NH - 1, axis=0), 0.0)
        return acc

    def channel_stats(acc):
        # One-pass stats: per-lane sums over rows, then per-channel reduce +
        # broadcast across the packed (w, c) lane axis via log2(W) lane rolls
        # (shifts are multiples of cout so channel residues are preserved).
        s1 = jnp.sum(acc, axis=0, keepdims=True)             # (1, W*Cout)
        s2 = jnp.sum(acc * acc, axis=0, keepdims=True)
        sh = cout * (width // 2)
        while sh >= cout:
            s1 = s1 + pltpu.roll(s1, shift=sh, axis=1)
            s2 = s2 + pltpu.roll(s2, shift=sh, axis=1)
            sh //= 2
        mu = s1 * inv_n
        var = jnp.maximum(s2 * inv_n - mu * mu, 0.0)          # clamp cancellation
        return mu, var

    def bn(acc, g_row, be_row):
        mu, var = channel_stats(acc)
        scale = g_row * lax.rsqrt(var + EPS)
        shift = be_row - mu * scale
        return acc * scale + shift                            # one FMA pass

    pp = pp_ref[...]
    bs_row, g1_row, be1_row = pp[0:1, :], pp[1:2, :], pp[2:3, :]
    g2_row, be2_row = pp[3:4, :], pp[4:5, :]

    x2d = x_ref[...]

    # ---- conv1 (3 dy taps) + 1x1 skip: ONE wide MXU matmul ----
    acc_all1 = jnp.dot(x2d, rhs1_ref[...], preferred_element_type=jnp.float32)
    acc1 = combine_taps(acc_all1[:, 0:3 * WCout])
    skip = acc_all1[:, 3 * WCout:4 * WCout] + bs_row
    # conv bias b1 dropped: redundant under training-mode (batch-stat) BN.

    # ---- BN1 (batch stats) + ReLU; y1 stays in vregs, no VMEM round trip ----
    y1 = jnp.maximum(bn(acc1, g1_row, be1_row), 0.0).astype(jnp.bfloat16)

    # ---- conv2: one matmul over the 3-tap fused RHS ----
    acc_all2 = jnp.dot(y1, rhs2_ref[...], preferred_element_type=jnp.float32)
    acc2 = combine_taps(acc_all2)

    # ---- BN2, residual add, ReLU, single lane-dense bf16 store ----
    y2 = bn(acc2, g2_row, be2_row)
    out_ref[...] = jnp.maximum(y2 + skip, 0.0).astype(out_ref.dtype)


def _band_selector(width):
    # sel[dx, i, x] = 1 iff input column i feeds output column x at tap dx
    # (stride 1, pad 1); out-of-range taps are absent -> W zero-padding lives
    # in the band structure, never materialized.
    sel = np.zeros((3, width, width), np.float32)
    for dx in range(3):
        for x in range(width):
            i = x + dx - 1
            if 0 <= i < width:
                sel[dx, i, x] = 1.0
    return jnp.asarray(sel)


def prepare_block_params(params, w, in_c, out_c):
    """Build MXU-ready fused band matrices + packed per-channel params.
    Run ONCE when weights are set (hoisted out of the per-call forward)."""
    sel = _band_selector(w)
    w1 = params["w1"].reshape(3, 3, in_c, out_c)
    w2 = params["w2"].reshape(3, 3, out_c, out_c)
    t1 = jnp.einsum("dix,ydco->yicxo", sel, w1).reshape(3, w * in_c, w * out_c)
    t2 = jnp.einsum("dix,ydco->yicxo", sel, w2).reshape(3, w * out_c, w * out_c)
    s = jnp.einsum("ix,co->icxo", jnp.eye(w, dtype=jnp.float32),
                   params["ws"]).reshape(w * in_c, w * out_c)
    # conv1 RHS: [top | center | bottom | skip]  -> (W*Cin, 4*W*Cout)
    rhs1 = jnp.concatenate([t1[0], t1[1], t1[2], s], axis=1).astype(jnp.bfloat16)
    # conv2 RHS: [top | center | bottom]         -> (W*Cout, 3*W*Cout)
    rhs2 = jnp.concatenate([t2[0], t2[1], t2[2]], axis=1).astype(jnp.bfloat16)

    tile = lambda v: jnp.tile(jnp.reshape(v, (1, out_c)), (1, w)).astype(jnp.float32)
    pp = jnp.concatenate(
        [tile(params["bs"]), tile(params["g1"]), tile(params["be1"]),
         tile(params["g2"]), tile(params["be2"]),
         jnp.zeros((3, w * out_c), jnp.float32)], axis=0)   # pad to 8 sublanes

    return dict(rhs1=rhs1, rhs2=rhs2, pp=pp, w=w, in_c=in_c, out_c=out_c)


def basic_block(x_nchw, prepped):
    N, Cin, H, W = x_nchw.shape
    Cout = prepped["out_c"]
    assert W & (W - 1) == 0, "packed-lane layout assumes power-of-two W"
    assert Cin == prepped["in_c"] and W == prepped["w"]

    # NCHW -> NHWC -> packed rows (N*H, W*Cin); bf16 MXU operands.
    x_pk = jnp.transpose(x_nchw, (0, 2, 3, 1)).reshape(
        N * H, W * Cin).astype(jnp.bfloat16)

    kernel = functools.partial(basic_block_kernel,
                               n_img=N, height=H, width=W, cout=Cout)
    out2d = pl.pallas_call(
        kernel,
        out_shape=jax.ShapeDtypeStruct((N * H, W * Cout), jnp.bfloat16),
        in_specs=[pl.BlockSpec(memory_space=pltpu.MemorySpace.VMEM)] * 4,
        out_specs=pl.BlockSpec(memory_space=pltpu.MemorySpace.VMEM),
    )(x_pk, prepped["rhs1"], prepped["rhs2"], prepped["pp"])

    return out2d.reshape(N, H, W, Cout).transpose(0, 3, 1, 2).astype(jnp.float32)


def ref_basic_block(x_nchw, params):
    """Pure-JAX reference with the same MXU precision policy (bf16 operands,
    f32 accumulation); BN / elementwise math in f32."""
    x = jnp.transpose(x_nchw, (0, 2, 3, 1)).astype(jnp.float32)

    def conv3x3(inp, w_tap, b):
        cin, cout = w_tap.shape[1], w_tap.shape[2]
        w = w_tap.reshape(3, 3, cin, cout)
        y = lax.conv_general_dilated(
            inp.astype(jnp.bfloat16), w.astype(jnp.bfloat16), (1, 1),
            ((1, 1), (1, 1)), dimension_numbers=("NHWC", "HWIO", "NHWC"),
            preferred_element_type=jnp.float32)
        return y + b.reshape(1, 1, 1, -1)

    def bn(y, g, be):
        mu = y.mean(axis=(0, 1, 2), keepdims=True)
        var = ((y - mu) ** 2).mean(axis=(0, 1, 2), keepdims=True)
        return (y - mu) * lax.rsqrt(var + EPS) * g.reshape(1, 1, 1, -1) \
            + be.reshape(1, 1, 1, -1)

    y = conv3x3(x, params["w1"], params["b1"])
    y = jnp.maximum(bn(y, params["g1"], params["be1"]), 0.0)
    y = conv3x3(y, params["w2"], params["b2"])
    y = bn(y, params["g2"], params["be2"])
    skip = jnp.einsum("nhwc,cd->nhwd", x.astype(jnp.bfloat16),
                      params["ws"].astype(jnp.bfloat16),
                      preferred_element_type=jnp.float32) \
        + params["bs"].reshape(1, 1, 1, -1)
    return jnp.maximum(y + skip, 0.0).transpose(0, 3, 1, 2)


def init_params(key, in_c, out_c):
    ks = jax.random.split(key, 8)
    p = {
        "w1": 0.1 * jax.random.normal(ks[0], (9, in_c, out_c), jnp.float32),
        "b1": 0.1 * jax.random.normal(ks[1], (1, out_c), jnp.float32),
        "g1": 1.0 + 0.1 * jax.random.normal(ks[2], (1, out_c), jnp.float32),
        "be1": 0.1 * jax.random.normal(ks[3], (1, out_c), jnp.float32),
        "w2": 0.1 * jax.random.normal(ks[4], (9, out_c, out_c), jnp.float32),
        "b2": 0.1 * jax.random.normal(ks[5], (1, out_c), jnp.float32),
        "g2": 1.0 + 0.1 * jax.random.normal(ks[6], (1, out_c), jnp.float32),
        "be2": 0.1 * jax.random.normal(ks[7], (1, out_c), jnp.float32),
    }
    ks2 = jax.random.split(ks[0], 2)
    p["ws"] = 0.1 * jax.random.normal(ks2[0], (in_c, out_c), jnp.float32)
    p["bs"] = 0.1 * jax.random.normal(ks2[1], (1, out_c), jnp.float32)
    return p


if __name__ == "__main__":
    key = jax.random.PRNGKey(0)
    k_x, k_p = jax.random.split(key)

    # down=False, in_c != out_c -> 1x1-conv skip path
    N, in_c, out_c, H, W = 2, 4, 8, 16, 16
    x = jax.random.normal(k_x, (N, in_c, H, W), jnp.float32)
    params = init_params(k_p, in_c, out_c)

    # Weight-dependent band matrices built once, outside the forward pass.
    prepped = prepare_block_params(params, W, in_c, out_c)

    out = jax.block_until_ready(basic_block(x, prepped))
    ref = jax.block_until_ready(ref_basic_block(x, params))

    assert out.shape == (N, out_c, H, W), out.shape
    # bf16 MXU operands + one-pass BN stats + bf16 output store => small drift.
    assert jnp.allclose(out, ref, atol=2e-2, rtol=2e-2), \
        float(jnp.max(jnp.abs(out - ref)))
    print("KERNEL_OK")
</pallas_src>

<mosaic_0001>
module attributes {stable_mosaic.version = 11 : i64} {
  func.func @basic_block_kernel(%arg0: memref<32x64xbf16, #tpu.memory_space<vmem>>, %arg1: memref<64x512xbf16, #tpu.memory_space<vmem>>, %arg2: memref<128x384xbf16, #tpu.memory_space<vmem>>, %arg3: memref<8x128xf32, #tpu.memory_space<vmem>>, %arg4: memref<32x128xbf16, #tpu.memory_space<vmem>>) attributes {dimension_semantics = [], scalar_prefetch = 0 : i64, scratch_operands = 0 : i64, tpu.core_type = #tpu.core_type<tc>} {
    %0 = tpu.iota {dimensions = array<i32: 0>} : vector<32x128xi32>
    %c15_i32 = arith.constant 15 : i32
    %1 = vector.broadcast %c15_i32 : i32 to vector<32x128xi32>
    %2 = arith.andi %0, %1 : vector<32x128xi32>
    %c0_i32 = arith.constant 0 : i32
    %3 = vector.broadcast %c0_i32 : i32 to vector<32x128xi32>
    %4 = arith.cmpi ne, %2, %3 : vector<32x128xi32>
    %c15_i32_0 = arith.constant 15 : i32
    %5 = vector.broadcast %c15_i32_0 : i32 to vector<32x128xi32>
    %6 = arith.cmpi ne, %2, %5 : vector<32x128xi32>
    %c0 = arith.constant 0 : index
    %c0_1 = arith.constant 0 : index
    %7 = vector.load %arg3[%c0, %c0_1] : memref<8x128xf32, #tpu.memory_space<vmem>>, vector<8x128xf32>
    %8 = vector.extract_strided_slice %7 {offsets = [0, 0], sizes = [1, 128], strides = [1, 1]} : vector<8x128xf32> to vector<1x128xf32>
    %9 = vector.extract_strided_slice %7 {offsets = [1, 0], sizes = [1, 128], strides = [1, 1]} : vector<8x128xf32> to vector<1x128xf32>
    %10 = vector.extract_strided_slice %7 {offsets = [2, 0], sizes = [1, 128], strides = [1, 1]} : vector<8x128xf32> to vector<1x128xf32>
    %11 = vector.extract_strided_slice %7 {offsets = [3, 0], sizes = [1, 128], strides = [1, 1]} : vector<8x128xf32> to vector<1x128xf32>
    %12 = vector.extract_strided_slice %7 {offsets = [4, 0], sizes = [1, 128], strides = [1, 1]} : vector<8x128xf32> to vector<1x128xf32>
    %c0_2 = arith.constant 0 : index
    %c0_3 = arith.constant 0 : index
    %13 = vector.load %arg0[%c0_2, %c0_3] : memref<32x64xbf16, #tpu.memory_space<vmem>>, vector<32x64xbf16>
    %c0_4 = arith.constant 0 : index
    %c0_5 = arith.constant 0 : index
    %14 = vector.load %arg1[%c0_4, %c0_5] : memref<64x512xbf16, #tpu.memory_space<vmem>>, vector<64x512xbf16>
    %cst = arith.constant dense<0.000000e+00> : vector<32x512xf32>
    %15 = tpu.matmul %13, %14, %cst {dimension_numbers = #tpu.dot_dimension_numbers<[1], [0], [0], [1], [0, 0, 1, 1], [], []>} : vector<32x64xbf16>, vector<64x512xbf16>, vector<32x512xf32> -> vector<32x512xf32>
    %16 = vector.extract_strided_slice %15 {offsets = [0, 0], sizes = [32, 384], strides = [1, 1]} : vector<32x512xf32> to vector<32x384xf32>
    %17 = vector.extract_strided_slice %16 {offsets = [0, 0], sizes = [32, 128], strides = [1, 1]} : vector<32x384xf32> to vector<32x128xf32>
    %18 = vector.extract_strided_slice %16 {offsets = [0, 128], sizes = [32, 128], strides = [1, 1]} : vector<32x384xf32> to vector<32x128xf32>
    %19 = vector.extract_strided_slice %16 {offsets = [0, 256], sizes = [32, 128], strides = [1, 1]} : vector<32x384xf32> to vector<32x128xf32>
    %c1_i32 = arith.constant 1 : i32
    %20 = tpu.dynamic_rotate %17 by %c1_i32 dim 0 : vector<32x128xf32>, i32 -> vector<32x128xf32>
    %cst_6 = arith.constant 0.000000e+00 : f32
    %21 = vector.broadcast %cst_6 : f32 to vector<32x128xf32>
    %22 = arith.select %4, %20, %21 : vector<32x128xi1>, vector<32x128xf32>
    %23 = arith.addf %18, %22 : vector<32x128xf32>
    %c31_i32 = arith.constant 31 : i32
    %24 = tpu.dynamic_rotate %19 by %c31_i32 dim 0 : vector<32x128xf32>, i32 -> vector<32x128xf32>
    %cst_7 = arith.constant 0.000000e+00 : f32
    %25 = vector.broadcast %cst_7 : f32 to vector<32x128xf32>
    %26 = arith.select %6, %24, %25 : vector<32x128xi1>, vector<32x128xf32>
    %27 = arith.addf %23, %26 : vector<32x128xf32>
    %28 = vector.extract_strided_slice %15 {offsets = [0, 384], sizes = [32, 128], strides = [1, 1]} : vector<32x512xf32> to vector<32x128xf32>
    %29 = vector.broadcast %8 : vector<1x128xf32> to vector<32x128xf32>
    %30 = arith.addf %28, %29 : vector<32x128xf32>
    %cst_8 = arith.constant dense<0.000000e+00> : vector<128xf32>
    %31 = vector.multi_reduction <add>, %27, %cst_8 [0] : vector<32x128xf32> to vector<128xf32>
    %32 = vector.shape_cast %31 : vector<128xf32> to vector<1x128xf32>
    %33 = arith.mulf %27, %27 : vector<32x128xf32>
    %cst_9 = arith.constant dense<0.000000e+00> : vector<128xf32>
    %34 = vector.multi_reduction <add>, %33, %cst_9 [0] : vector<32x128xf32> to vector<128xf32>
    %35 = vector.shape_cast %34 : vector<128xf32> to vector<1x128xf32>
    %c64_i32 = arith.constant 64 : i32
    %36 = tpu.dynamic_rotate %32 by %c64_i32 dim 1 : vector<1x128xf32>, i32 -> vector<1x128xf32>
    %37 = arith.addf %32, %36 : vector<1x128xf32>
    %c64_i32_10 = arith.constant 64 : i32
    %38 = tpu.dynamic_rotate %35 by %c64_i32_10 dim 1 : vector<1x128xf32>, i32 -> vector<1x128xf32>
    %39 = arith.addf %35, %38 : vector<1x128xf32>
    %c32_i32 = arith.constant 32 : i32
    %40 = tpu.dynamic_rotate %37 by %c32_i32 dim 1 : vector<1x128xf32>, i32 -> vector<1x128xf32>
    %41 = arith.addf %37, %40 : vector<1x128xf32>
    %c32_i32_11 = arith.constant 32 : i32
    %42 = tpu.dynamic_rotate %39 by %c32_i32_11 dim 1 : vector<1x128xf32>, i32 -> vector<1x128xf32>
    %43 = arith.addf %39, %42 : vector<1x128xf32>
    %c16_i32 = arith.constant 16 : i32
    %44 = tpu.dynamic_rotate %41 by %c16_i32 dim 1 : vector<1x128xf32>, i32 -> vector<1x128xf32>
    %45 = arith.addf %41, %44 : vector<1x128xf32>
    %c16_i32_12 = arith.constant 16 : i32
    %46 = tpu.dynamic_rotate %43 by %c16_i32_12 dim 1 : vector<1x128xf32>, i32 -> vector<1x128xf32>
    %47 = arith.addf %43, %46 : vector<1x128xf32>
    %c8_i32 = arith.constant 8 : i32
    %48 = tpu.dynamic_rotate %45 by %c8_i32 dim 1 : vector<1x128xf32>, i32 -> vector<1x128xf32>
    %49 = arith.addf %45, %48 : vector<1x128xf32>
    %c8_i32_13 = arith.constant 8 : i32
    %50 = tpu.dynamic_rotate %47 by %c8_i32_13 dim 1 : vector<1x128xf32>, i32 -> vector<1x128xf32>
    %51 = arith.addf %47, %50 : vector<1x128xf32>
    %cst_14 = arith.constant 0.001953125 : f32
    %52 = vector.broadcast %cst_14 : f32 to vector<1x128xf32>
    %53 = arith.mulf %49, %52 : vector<1x128xf32>
    %cst_15 = arith.constant 0.001953125 : f32
    %54 = vector.broadcast %cst_15 : f32 to vector<1x128xf32>
    %55 = arith.mulf %51, %54 : vector<1x128xf32>
    %56 = arith.mulf %53, %53 : vector<1x128xf32>
    %57 = arith.subf %55, %56 : vector<1x128xf32>
    %cst_16 = arith.constant 0.000000e+00 : f32
    %58 = vector.broadcast %cst_16 : f32 to vector<1x128xf32>
    %59 = arith.maximumf %57, %58 : vector<1x128xf32>
    %cst_17 = arith.constant 9.99999974E-6 : f32
    %60 = vector.broadcast %cst_17 : f32 to vector<1x128xf32>
    %61 = arith.addf %59, %60 : vector<1x128xf32>
    %62 = math.rsqrt %61 : vector<1x128xf32>
    %63 = arith.mulf %9, %62 : vector<1x128xf32>
    %64 = arith.mulf %53, %63 : vector<1x128xf32>
    %65 = arith.subf %10, %64 : vector<1x128xf32>
    %66 = vector.broadcast %63 : vector<1x128xf32> to vector<32x128xf32>
    %67 = arith.mulf %27, %66 : vector<32x128xf32>
    %68 = vector.broadcast %65 : vector<1x128xf32> to vector<32x128xf32>
    %69 = arith.addf %67, %68 : vector<32x128xf32>
    %cst_18 = arith.constant 0.000000e+00 : f32
    %70 = vector.broadcast %cst_18 : f32 to vector<32x128xf32>
    %71 = arith.maximumf %69, %70 : vector<32x128xf32>
    %72 = arith.truncf %71 : vector<32x128xf32> to vector<32x128xbf16>
    %c0_19 = arith.constant 0 : index
    %c0_20 = arith.constant 0 : index
    %73 = vector.load %arg2[%c0_19, %c0_20] : memref<128x384xbf16, #tpu.memory_space<vmem>>, vector<128x384xbf16>
    %cst_21 = arith.constant dense<0.000000e+00> : vector<32x384xf32>
    %74 = tpu.matmul %72, %73, %cst_21 {dimension_numbers = #tpu.dot_dimension_numbers<[1], [0], [0], [1], [0, 0, 1, 1], [], []>} : vector<32x128xbf16>, vector<128x384xbf16>, vector<32x384xf32> -> vector<32x384xf32>
    %75 = vector.extract_strided_slice %74 {offsets = [0, 0], sizes = [32, 128], strides = [1, 1]} : vector<32x384xf32> to vector<32x128xf32>
    %76 = vector.extract_strided_slice %74 {offsets = [0, 128], sizes = [32, 128], strides = [1, 1]} : vector<32x384xf32> to vector<32x128xf32>
    %77 = vector.extract_strided_slice %74 {offsets = [0, 256], sizes = [32, 128], strides = [1, 1]} : vector<32x384xf32> to vector<32x128xf32>
    %c1_i32_22 = arith.constant 1 : i32
    %78 = tpu.dynamic_rotate %75 by %c1_i32_22 dim 0 : vector<32x128xf32>, i32 -> vector<32x128xf32>
    %cst_23 = arith.constant 0.000000e+00 : f32
    %79 = vector.broadcast %cst_23 : f32 to vector<32x128xf32>
    %80 = arith.select %4, %78, %79 : vector<32x128xi1>, vector<32x128xf32>
    %81 = arith.addf %76, %80 : vector<32x128xf32>
    %c31_i32_24 = arith.constant 31 : i32
    %82 = tpu.dynamic_rotate %77 by %c31_i32_24 dim 0 : vector<32x128xf32>, i32 -> vector<32x128xf32>
    %cst_25 = arith.constant 0.000000e+00 : f32
    %83 = vector.broadcast %cst_25 : f32 to vector<32x128xf32>
    %84 = arith.select %6, %82, %83 : vector<32x128xi1>, vector<32x128xf32>
    %85 = arith.addf %81, %84 : vector<32x128xf32>
    %cst_26 = arith.constant dense<0.000000e+00> : vector<128xf32>
    %86 = vector.multi_reduction <add>, %85, %cst_26 [0] : vector<32x128xf32> to vector<128xf32>
    %87 = vector.shape_cast %86 : vector<128xf32> to vector<1x128xf32>
    %88 = arith.mulf %85, %85 : vector<32x128xf32>
    %cst_27 = arith.constant dense<0.000000e+00> : vector<128xf32>
    %89 = vector.multi_reduction <add>, %88, %cst_27 [0] : vector<32x128xf32> to vector<128xf32>
    %90 = vector.shape_cast %89 : vector<128xf32> to vector<1x128xf32>
    %c64_i32_28 = arith.constant 64 : i32
    %91 = tpu.dynamic_rotate %87 by %c64_i32_28 dim 1 : vector<1x128xf32>, i32 -> vector<1x128xf32>
    %92 = arith.addf %87, %91 : vector<1x128xf32>
    %c64_i32_29 = arith.constant 64 : i32
    %93 = tpu.dynamic_rotate %90 by %c64_i32_29 dim 1 : vector<1x128xf32>, i32 -> vector<1x128xf32>
    %94 = arith.addf %90, %93 : vector<1x128xf32>
    %c32_i32_30 = arith.constant 32 : i32
    %95 = tpu.dynamic_rotate %92 by %c32_i32_30 dim 1 : vector<1x128xf32>, i32 -> vector<1x128xf32>
    %96 = arith.addf %92, %95 : vector<1x128xf32>
    %c32_i32_31 = arith.constant 32 : i32
    %97 = tpu.dynamic_rotate %94 by %c32_i32_31 dim 1 : vector<1x128xf32>, i32 -> vector<1x128xf32>
    %98 = arith.addf %94, %97 : vector<1x128xf32>
    %c16_i32_32 = arith.constant 16 : i32
    %99 = tpu.dynamic_rotate %96 by %c16_i32_32 dim 1 : vector<1x128xf32>, i32 -> vector<1x128xf32>
    %100 = arith.addf %96, %99 : vector<1x128xf32>
    %c16_i32_33 = arith.constant 16 : i32
    %101 = tpu.dynamic_rotate %98 by %c16_i32_33 dim 1 : vector<1x128xf32>, i32 -> vector<1x128xf32>
    %102 = arith.addf %98, %101 : vector<1x128xf32>
    %c8_i32_34 = arith.constant 8 : i32
    %103 = tpu.dynamic_rotate %100 by %c8_i32_34 dim 1 : vector<1x128xf32>, i32 -> vector<1x128xf32>
    %104 = arith.addf %100, %103 : vector<1x128xf32>
    %c8_i32_35 = arith.constant 8 : i32
    %105 = tpu.dynamic_rotate %102 by %c8_i32_35 dim 1 : vector<1x128xf32>, i32 -> vector<1x128xf32>
    %106 = arith.addf %102, %105 : vector<1x128xf32>
    %cst_36 = arith.constant 0.001953125 : f32
    %107 = vector.broadcast %cst_36 : f32 to vector<1x128xf32>
    %108 = arith.mulf %104, %107 : vector<1x128xf32>
    %cst_37 = arith.constant 0.001953125 : f32
    %109 = vector.broadcast %cst_37 : f32 to vector<1x128xf32>
    %110 = arith.mulf %106, %109 : vector<1x128xf32>
    %111 = arith.mulf %108, %108 : vector<1x128xf32>
    %112 = arith.subf %110, %111 : vector<1x128xf32>
    %cst_38 = arith.constant 0.000000e+00 : f32
    %113 = vector.broadcast %cst_38 : f32 to vector<1x128xf32>
    %114 = arith.maximumf %112, %113 : vector<1x128xf32>
    %cst_39 = arith.constant 9.99999974E-6 : f32
    %115 = vector.broadcast %cst_39 : f32 to vector<1x128xf32>
    %116 = arith.addf %114, %115 : vector<1x128xf32>
    %117 = math.rsqrt %116 : vector<1x128xf32>
    %118 = arith.mulf %11, %117 : vector<1x128xf32>
    %119 = arith.mulf %108, %118 : vector<1x128xf32>
    %120 = arith.subf %12, %119 : vector<1x128xf32>
    %121 = vector.broadcast %118 : vector<1x128xf32> to vector<32x128xf32>
    %122 = arith.mulf %85, %121 : vector<32x128xf32>
    %123 = vector.broadcast %120 : vector<1x128xf32> to vector<32x128xf32>
    %124 = arith.addf %122, %123 : vector<32x128xf32>
    %125 = arith.addf %124, %30 : vector<32x128xf32>
    %cst_40 = arith.constant 0.000000e+00 : f32
    %126 = vector.broadcast %cst_40 : f32 to vector<32x128xf32>
    %127 = arith.maximumf %125, %126 : vector<32x128xf32>
    %128 = arith.truncf %127 : vector<32x128xf32> to vector<32x128xbf16>
    %c0_41 = arith.constant 0 : index
    %c0_42 = arith.constant 0 : index
    %129 = vector.load %arg4[%c0_41, %c0_42] : memref<32x128xbf16, #tpu.memory_space<vmem>>, vector<32x128xbf16>
    tpu.vector_store %arg4[%c0_41, %c0_42], %128 {strides = array<i32>} : memref<32x128xbf16, #tpu.memory_space<vmem>>, vector<32x128xbf16>,
    return
  }
}

</mosaic_0001>

<llo_original>
// kernel: tpu_custom_call.1
$region0: #{tpu_custom_call.1}
  #allocation0 [shape = 'u32[]', space=smem, size = 0x4, offset = 0x4, fixed_abs, tag = 'smem constant byte address 0x4 - core index']
  #allocation1 [shape = 'u32[144,128]{1,0:T(1,128)}', space=vmem, size = 0x12000, scoped, tag = 'internal scratch']
  %s0 = inlined_call_operand.hbm [shape: bf16[32,64], index: 0, kind: input, shape index: {}]
  %s1 = inlined_call_operand.hbm [shape: bf16[64,512], index: 1, kind: input, shape index: {}]
  %s2 = inlined_call_operand.hbm [shape: bf16[128,384], index: 2, kind: input, shape index: {}]
  %s3 = inlined_call_operand.vmem [shape: f32[8,128], index: 3, kind: input, shape index: {}]
  %s4 = inlined_call_operand.hbm [shape: bf16[32,128], index: 4, kind: output, shape index: {}]
  %s5 = sld [smem:[#allocation0]]
  $region38: #{tpu_custom_call.1} parent=0
    _
  %s7 = ssub.s32 1, %s5
  %s8 = scalar_select 0, %s7, %s5
  $region1: #{tpu_custom_call.1} parent=0
    #allocation2 [shape = 'u8[8192]{0}', space=vmem, size = 0x2000, scoped, tag = 'input window, operand 0, single buffered']
    #allocation3 [shape = 's32[1]{0}', space=sflag, size = 0x4, scoped, tag = 'scoped memory for tpu_custom_call.1']
    #allocation4 [shape = 's32[1]{0}', space=sflag, size = 0x4, scoped, tag = 'scoped memory for tpu_custom_call.1']
    #allocation5 [shape = 'u8[65536]{0}', space=vmem, size = 0x10000, scoped, tag = 'input window, operand 1, single buffered']
    #allocation6 [shape = 's32[1]{0}', space=sflag, size = 0x4, scoped, tag = 'scoped memory for tpu_custom_call.1']
    #allocation7 [shape = 'u8[98304]{0}', space=vmem, size = 0x18000, scoped, tag = 'input window, operand 2, single buffered']
    #allocation8 [shape = 'u8[8192]{0}', space=vmem, size = 0x2000, scoped, tag = 'output window, operand 0, single buffered']
    %9 = vsyncpa [#allocation3], 0
    %10 = vsyncpa [#allocation6], 0
    %11 = vsyncpa [#allocation4], 0
    // Predicated region
    $region2: #{tpu_custom_call.1} parent=1 // pred_check
      _
    $region3: #{tpu_custom_call.1} parent=1 // pred_check_branch
      %13 = sbr.rel (0) target = $region5
    $region4: #{tpu_custom_call.1} parent=1 // pred_region
      %s15 = ssub.s32 256, 256
      %16 = vsyncadd [#allocation3], %s15
      %s17 = sshll.u32 [#allocation2], 4
      %s18 = int_to_ptr.vmem [resolvable:$true] %s17
      %23 = dma.hbm_to_vmem [thread:$0]  %s0, 256, %s18, [#allocation3], 64, 64, 4
    $region5: #{tpu_custom_call.1} parent=1 // pred_fallthru
      _
    // Predicated region
    $region6: #{tpu_custom_call.1} parent=1 // pred_check
      _
    $region7: #{tpu_custom_call.1} parent=1 // pred_check_branch
      %25 = sbr.rel (0) target = $region9
    $region8: #{tpu_custom_call.1} parent=1 // pred_region
      %s27 = ssub.s32 2048, 2048
      %28 = vsyncadd [#allocation6], %s27
      %s29 = sshll.u32 [#allocation5], 4
      %s30 = int_to_ptr.vmem [resolvable:$true] %s29
      %35 = dma.hbm_to_vmem [thread:$0]  %s1, 2048, %s30, [#allocation6], 256, 256, 16
    $region9: #{tpu_custom_call.1} parent=1 // pred_fallthru
      _
    // Predicated region
    $region10: #{tpu_custom_call.1} parent=1 // pred_check
      _
    $region11: #{tpu_custom_call.1} parent=1 // pred_check_branch
      %37 = sbr.rel (0) target = $region13
    $region12: #{tpu_custom_call.1} parent=1 // pred_region
      %s39 = ssub.s32 3072, 3072
      %40 = vsyncadd [#allocation6], %s39
      %s41 = sshll.u32 [#allocation7], 4
      %s42 = int_to_ptr.vmem [resolvable:$true] %s41
      %47 = dma.hbm_to_vmem [thread:$0]  %s2, 3072, %s42, [#allocation6], 192, 192, 12
    $region13: #{tpu_custom_call.1} parent=1 // pred_fallthru
      _
    // Predicated region
    $region14: #{tpu_custom_call.1} parent=1 // pred_check
      _
    $region15: #{tpu_custom_call.1} parent=1 // pred_check_branch
      %49 = sbr.rel (0) target = $region17
    $region16: #{tpu_custom_call.1} parent=1 // pred_region
      _
    $region17: #{tpu_custom_call.1} parent=1 // pred_fallthru
      _
    // Predicated region
    $region18: #{tpu_custom_call.1} parent=1 // pred_check
      _
    $region19: #{tpu_custom_call.1} parent=1 // pred_check_branch
      %51 = sbr.rel (0) target = $region21
    $region20: #{tpu_custom_call.1} parent=1 // pred_region
      %52 = dma.done [#allocation3], 256
    $region21: #{tpu_custom_call.1} parent=1 // pred_fallthru
      _
    // Predicated region
    $region22: #{tpu_custom_call.1} parent=1 // pred_check
      _
    $region23: #{tpu_custom_call.1} parent=1 // pred_check_branch
      %54 = sbr.rel (0) target = $region25
    $region24: #{tpu_custom_call.1} parent=1 // pred_region
      %55 = dma.done [#allocation6], 2048
    $region25: #{tpu_custom_call.1} parent=1 // pred_fallthru
      _
    // Predicated region
    $region26: #{tpu_custom_call.1} parent=1 // pred_check
      _
    $region27: #{tpu_custom_call.1} parent=1 // pred_check_branch
      %57 = sbr.rel (0) target = $region29
    $region28: #{tpu_custom_call.1} parent=1 // pred_region
      %58 = dma.done [#allocation6], 3072
    $region29: #{tpu_custom_call.1} parent=1 // pred_fallthru
      _
    %v60 = vlaneseq
    %v61 = vshrl.u32 %v60, 7
    %v62 = vadd.s32 %v61, 8
    %v63 = vadd.s32 %v61, 16
    %v64 = vadd.s32 %v61, 24
    %v65 = vand.u32 %v61, 15
    %v66 = vand.u32 %v62, 15
    %v67 = vand.u32 %v63, 15
    %v68 = vand.u32 %v64, 15
    %vm69 = vcmp.ne.s32.totalorder %v65, 0
    %vm70 = vcmp.ne.s32.totalorder %v66, 0
    %vm71 = vcmp.ne.s32.totalorder %v67, 0
    %vm72 = vcmp.ne.s32.totalorder %v68, 0
    %vm73 = vcmp.ne.s32.totalorder %v65, 15
    %vm74 = vcmp.ne.s32.totalorder %v66, 15
    %vm75 = vcmp.ne.s32.totalorder %v67, 15
    %vm76 = vcmp.ne.s32.totalorder %v68, 15
    %v77 = vld [vmem:[%s3] sm:$0xff]
    %v78 = vld [vmem:[#allocation2] sm:$0xf]
    %v79 = vld [vmem:[#allocation2 + $0x4] sm:$0xf]
    %v80 = vld [vmem:[#allocation2 + $0x8] sm:$0xf]
    %v81 = vld [vmem:[#allocation2 + $0xc] sm:$0xf]
    %v82 = vld [vmem:[#allocation5] sm:$0xff]
    %v83 = vld [vmem:[#allocation5 + $0x8] sm:$0xff]
    %v84 = vld [vmem:[#allocation5 + $0x10] sm:$0xff]
    %v85 = vld [vmem:[#allocation5 + $0x18] sm:$0xff]
    %v86 = vld [vmem:[#allocation5 + $0x20] sm:$0xff]
    %v87 = vld [vmem:[#allocation5 + $0x28] sm:$0xff]
    %v88 = vld [vmem:[#allocation5 + $0x30] sm:$0xff]
    %v89 = vld [vmem:[#allocation5 + $0x38] sm:$0xff]
    %v90 = vld [vmem:[#allocation5 + $0x40] sm:$0xff]
    %v91 = vld [vmem:[#allocation5 + $0x48] sm:$0xff]
    %v92 = vld [vmem:[#allocation5 + $0x50] sm:$0xff]
    %v93 = vld [vmem:[#allocation5 + $0x58] sm:$0xff]
    %v94 = vld [vmem:[#allocation5 + $0x60] sm:$0xff]
    %v95 = vld [vmem:[#allocation5 + $0x68] sm:$0xff]
    %v96 = vld [vmem:[#allocation5 + $0x70] sm:$0xff]
    %v97 = vld [vmem:[#allocation5 + $0x78] sm:$0xff]
    %v102 = vunpack.c.l.b16 %v78
    %v103 = vunpack.c.l.b16 %v79
    %v104 = vunpack.c.l.b16 %v80
    %v105 = vunpack.c.l.b16 %v81
    %v106 = vpack.c.b16 %v103, %v102
    %v107 = vpack.c.b16 %v105, %v104
    %v124 = vunpack.c.l.b16 %v82
    %v125 = vunpack.c.h.b16 %v82
    %v126 = vunpack.c.l.b16 %v83
    %v127 = vunpack.c.h.b16 %v83
    %v128 = vunpack.c.l.b16 %v84
    %v129 = vunpack.c.h.b16 %v84
    %v130 = vunpack.c.l.b16 %v85
    %v131 = vunpack.c.h.b16 %v85
    %v132 = vunpack.c.l.b16 %v86
    %v133 = vunpack.c.h.b16 %v86
    %v134 = vunpack.c.l.b16 %v87
    %v135 = vunpack.c.h.b16 %v87
    %v136 = vunpack.c.l.b16 %v88
    %v137 = vunpack.c.h.b16 %v88
    %v138 = vunpack.c.l.b16 %v89
    %v139 = vunpack.c.h.b16 %v89
    %v140 = vunpack.c.l.b16 %v90
    %v141 = vunpack.c.h.b16 %v90
    %v142 = vunpack.c.l.b16 %v91
    %v143 = vunpack.c.h.b16 %v91
    %v144 = vunpack.c.l.b16 %v92
    %v145 = vunpack.c.h.b16 %v92
    %v146 = vunpack.c.l.b16 %v93
    %v147 = vunpack.c.h.b16 %v93
    %v148 = vunpack.c.l.b16 %v94
    %v149 = vunpack.c.h.b16 %v94
    %v150 = vunpack.c.l.b16 %v95
    %v151 = vunpack.c.h.b16 %v95
    %v152 = vunpack.c.l.b16 %v96
    %v153 = vunpack.c.h.b16 %v96
    %v154 = vunpack.c.l.b16 %v97
    %v155 = vunpack.c.h.b16 %v97
    %v156 = vpack.c.b16 %v128, %v124
    %v157 = vpack.c.b16 %v129, %v125
    %v158 = vpack.c.b16 %v130, %v126
    %v159 = vpack.c.b16 %v131, %v127
    %v160 = vpack.c.b16 %v136, %v132
    %v161 = vpack.c.b16 %v137, %v133
    %v162 = vpack.c.b16 %v138, %v134
    %v163 = vpack.c.b16 %v139, %v135
    %v164 = vpack.c.b16 %v144, %v140
    %v165 = vpack.c.b16 %v145, %v141
    %v166 = vpack.c.b16 %v146, %v142
    %v167 = vpack.c.b16 %v147, %v143
    %v168 = vpack.c.b16 %v152, %v148
    %v169 = vpack.c.b16 %v153, %v149
    %v170 = vpack.c.b16 %v154, %v150
    %v171 = vpack.c.b16 %v155, %v151
    %vm188 = vcmask 523264
    %v190 = vsel %vm188, %v106, 0
    %v193 = vsel %vm188, %v107, 0
    %195 = vmatprep.subr.bf16.mxu0 %v157
    %196 = vmatpush1.bf16.msra.mxu0 %v156
    %197 = vmatprep.subr.bf16.mxu0 %v161
    %198 = vmatpush1.bf16.msra.mxu0 %v160
    %199 = vmatprep.subr.bf16.mxu0 %v165
    %200 = vmatpush1.bf16.msra.mxu0 %v164
    %201 = vmatprep.subr.bf16.mxu0 %v169
    %202 = vmatpush1.bf16.msra.mxu0 %v168
    %203 = vmatprep.subr.bf16.mxu0 0
    %204 = vmatpush1.bf16.msra.mxu0 0
    %205 = vmatprep.subr.bf16.mxu0 0
    %206 = vmatpush1.bf16.msra.mxu0 0
    %207 = vmatprep.subr.bf16.mxu0 0
    %208 = vmatpush1.bf16.msra.mxu0 0
    %209 = vmatprep.subr.bf16.mxu0 0
    %210 = vmatpush1.bf16.msra.mxu0 0
    %211 = vmatprep.subr.bf16.mxu0 0
    %212 = vmatpush1.bf16.msra.mxu0 0
    %213 = vmatprep.subr.bf16.mxu0 0
    %214 = vmatpush1.bf16.msra.mxu0 0
    %215 = vmatprep.subr.bf16.mxu0 0
    %216 = vmatpush1.bf16.msra.mxu0 0
    %217 = vmatprep.subr.bf16.mxu0 0
    %218 = vmatpush1.bf16.msra.mxu0 0
    %219 = vmatprep.subr.bf16.mxu0 0
    %220 = vmatpush1.bf16.msra.mxu0 0
    %221 = vmatprep.subr.bf16.mxu0 0
    %222 = vmatpush1.bf16.msra.mxu0 0
    %223 = vmatprep.subr.bf16.mxu0 0
    %224 = vmatpush1.bf16.msra.mxu0 0
    %225 = vmatprep.subr.bf16.mxu0 0
    %226 = vmatpush1.bf16.msra.mxu0 0
    %227 = vmatprep.mubr.bf16.mxu0 0
    %228 = vmatmul.mubr.bf16.gmra.mrb[0].mxu0 %v190
    %v229 = vpop.f32.mrb[0].mxu0
    %v230 = vadd.f32 0.0, %v229
    %v231 = vpop.f32.mrb[0].mxu0
    %v232 = vadd.f32 0.0, %v231
    %v233 = vpop.f32.mrb[0].mxu0
    %v234 = vadd.f32 0.0, %v233
    %v235 = vpop.f32.mrb[0].mxu0
    %v236 = vadd.f32 0.0, %v235
    %237 = vmatprep.mubr.bf16.mxu0 0
    %238 = vmatmul.mubr.bf16.gmra.mrb[0].mxu0 %v193
    %v239 = vpop.f32.mrb[0].mxu0
    %v240 = vadd.f32 0.0, %v239
    %v241 = vpop.f32.mrb[0].mxu0
    %v242 = vadd.f32 0.0, %v241
    %v243 = vpop.f32.mrb[0].mxu0
    %v244 = vadd.f32 0.0, %v243
    %v245 = vpop.f32.mrb[0].mxu0
    %v246 = vadd.f32 0.0, %v245
    %247 = vdwg.mxu0
    %248 = vmatprep.subr.bf16.mxu0 %v159
    %249 = vmatpush1.bf16.msra.mxu0 %v158
    %250 = vmatprep.subr.bf16.mxu0 %v163
    %251 = vmatpush1.bf16.msra.mxu0 %v162
    %252 = vmatprep.subr.bf16.mxu0 %v167
    %253 = vmatpush1.bf16.msra.mxu0 %v166
    %254 = vmatprep.subr.bf16.mxu0 %v171
    %255 = vmatpush1.bf16.msra.mxu0 %v170
    %256 = vmatprep.subr.bf16.mxu0 0
    %257 = vmatpush1.bf16.msra.mxu0 0
    %258 = vmatprep.subr.bf16.mxu0 0
    %259 = vmatpush1.bf16.msra.mxu0 0
    %260 = vmatprep.subr.bf16.mxu0 0
    %261 = vmatpush1.bf16.msra.mxu0 0
    %262 = vmatprep.subr.bf16.mxu0 0
    %263 = vmatpush1.bf16.msra.mxu0 0
    %264 = vmatprep.subr.bf16.mxu0 0
    %265 = vmatpush1.bf16.msra.mxu0 0
    %266 = vmatprep.subr.bf16.mxu0 0
    %267 = vmatpush1.bf16.msra.mxu0 0
    %268 = vmatprep.subr.bf16.mxu0 0
    %269 = vmatpush1.bf16.msra.mxu0 0
    %270 = vmatprep.subr.bf16.mxu0 0
    %271 = vmatpush1.bf16.msra.mxu0 0
    %272 = vmatprep.subr.bf16.mxu0 0
    %273 = vmatpush1.bf16.msra.mxu0 0
    %274 = vmatprep.subr.bf16.mxu0 0
    %275 = vmatpush1.bf16.msra.mxu0 0
    %276 = vmatprep.subr.bf16.mxu0 0
    %277 = vmatpush1.bf16.msra.mxu0 0
    %278 = vmatprep.subr.bf16.mxu0 0
    %279 = vmatpush1.bf16.msra.mxu0 0
    %280 = vmatprep.mubr.bf16.mxu0 0
    %281 = vmatmul.mubr.bf16.gmra.mrb[0].mxu0 %v190
    %v282 = vpop.f32.mrb[0].mxu0
    %v283 = vadd.f32 0.0, %v282
    %v284 = vpop.f32.mrb[0].mxu0
    %v285 = vadd.f32 0.0, %v284
    %v286 = vpop.f32.mrb[0].mxu0
    %v287 = vadd.f32 0.0, %v286
    %v288 = vpop.f32.mrb[0].mxu0
    %v289 = vadd.f32 0.0, %v288
    %290 = vmatprep.mubr.bf16.mxu0 0
    %291 = vmatmul.mubr.bf16.gmra.mrb[0].mxu0 %v193
    %v292 = vpop.f32.mrb[0].mxu0
    %v293 = vadd.f32 0.0, %v292
    %v294 = vpop.f32.mrb[0].mxu0
    %v295 = vadd.f32 0.0, %v294
    %v296 = vpop.f32.mrb[0].mxu0
    %v297 = vadd.f32 0.0, %v296
    %v298 = vpop.f32.mrb[0].mxu0
    %v299 = vadd.f32 0.0, %v298
    %300 = vdwg.mxu0
    %v301 = vrot.slane %v230, 7
    %v302 = vrot.slane %v234, 7
    %v303 = vrot.slane %v240, 7
    %v304 = vrot.slane %v244, 7
    %vm305 = vcmp.lt.s32.totalorder %v61, 1
    %v306 = vsel %vm305, %v303, %v304
    %v307 = vsel %vm305, %v302, %v303
    %v308 = vsel %vm305, %v301, %v302
    %v309 = vsel %vm305, %v304, %v301
    %v310 = vsel %vm69, %v309, 0.0
    %v311 = vsel %vm70, %v308, 0.0
    %v312 = vsel %vm71, %v307, 0.0
    %v313 = vsel %vm72, %v306, 0.0
    %v314 = vadd.f32 %v232, %v310
    %v315 = vadd.f32 %v236, %v311
    %v316 = vadd.f32 %v242, %v312
    %v317 = vadd.f32 %v246, %v313
    %v318 = vrot.slane %v283, 1
    %v319 = vrot.slane %v287, 1
    %v320 = vrot.slane %v293, 1
    %v321 = vrot.slane %v297, 1
    %vm322 = vcmp.lt.s32.totalorder %v61, 7
    %v323 = vsel %vm322, %v320, %v321
    %v324 = vsel %vm322, %v319, %v320
    %v325 = vsel %vm322, %v318, %v319
    %v326 = vsel %vm322, %v321, %v318
    %v327 = vsel %vm73, %v325, 0.0
    %v328 = vsel %vm74, %v324, 0.0
    %v329 = vsel %vm75, %v323, 0.0
    %v330 = vsel %vm76, %v326, 0.0
    %v331 = vadd.f32 %v314, %v327
    %v332 = vadd.f32 %v315, %v328
    %v333 = vadd.f32 %v316, %v329
    %v334 = vadd.f32 %v317, %v330
    %v335 = vlaneseq
    %v336 = vshrl.u32 %v335, 7
    %v337 = vsub.s32 0, %v336
    %v338 = vrot.slane %v77, %v337
    %v339 = vadd.f32 %v285, %v338
    %v340 = vadd.f32 %v289, %v338
    %v341 = vadd.f32 %v295, %v338
    %v342 = vadd.f32 %v299, %v338
    %v343 = vadd.f32 %v331, %v332
    %v344 = vadd.f32 %v343, %v333
    %v345 = vadd.f32 %v344, %v334
    %v346 = vrot.slane %v345, 4
    %v347 = vadd.f32 %v345, %v346
    %v348 = vrot.slane %v347, 2
    %v349 = vadd.f32 %v347, %v348
    %v350 = vrot.slane %v349, 1
    %v351 = vadd.f32 %v349, %v350
    %v352 = vmul.f32 %v331, %v331
    %v353 = vmul.f32 %v332, %v332
    %v354 = vmul.f32 %v333, %v333
    %v355 = vmul.f32 %v334, %v334
    %v356 = vadd.f32 %v352, %v353
    %v357 = vadd.f32 %v356, %v354
    %v358 = vadd.f32 %v357, %v355
    %v359 = vrot.slane %v358, 4
    %v360 = vadd.f32 %v358, %v359
    %v361 = vrot.slane %v360, 2
    %v362 = vadd.f32 %v360, %v361
    %v363 = vrot.slane %v362, 1
    %v364 = vadd.f32 %v362, %v363
    %365 = vrot.lane.b32.xlu0 %v351, 64
    %v366 = vpop.permute.xlu0 %365
    %v367 = vadd.f32 %v351, %v366
    %368 = vrot.lane.b32.xlu0 %v364, 64
    %v369 = vpop.permute.xlu0 %368
    %v370 = vadd.f32 %v364, %v369
    %371 = vrot.lane.b32.xlu0 %v367, 32
    %v372 = vpop.permute.xlu0 %371
    %v373 = vadd.f32 %v367, %v372
    %374 = vrot.lane.b32.xlu0 %v370, 32
    %v375 = vpop.permute.xlu0 %374
    %v376 = vadd.f32 %v370, %v375
    %377 = vrot.lane.b32.xlu0 %v373, 16
    %v378 = vpop.permute.xlu0 %377
    %v379 = vadd.f32 %v373, %v378
    %380 = vrot.lane.b32.xlu0 %v376, 16
    %v381 = vpop.permute.xlu0 %380
    %v382 = vadd.f32 %v376, %v381
    %383 = vrot.lane.b32.xlu0 %v379, 8
    %v384 = vpop.permute.xlu0 %383
    %v385 = vadd.f32 %v379, %v384
    %386 = vrot.lane.b32.xlu0 %v382, 8
    %v387 = vpop.permute.xlu0 %386
    %v388 = vadd.f32 %v382, %v387
    %v389 = vmul.f32 %v385, 0.001953125
    %v390 = vmul.f32 %v388, 0.001953125
    %v391 = vmul.f32 %v389, %v389
    %v392 = vsub.f32 %v390, %v391
    %v393 = vmax.f32 %v392, 0.0
    %v394 = vadd.f32 %v393, 1e-05
    %v395 = vrsqrt.pop %v394
    %v397 = vrot.slane %v395, 7
    %v399 = vmul.f32 %v77, %v397
    %v401 = vrot.slane %v399, 1
    %v403 = vmul.f32 %v389, %v401
    %v405 = vrot.slane %v403, 6
    %v407 = vsub.f32 %v77, %v405
    %v408 = vlaneseq
    %v409 = vshrl.u32 %v408, 7
    %v410 = vsub.s32 1, %v409
    %v411 = vrot.slane %v399, %v410
    %v412 = vmul.f32 %v331, %v411
    %v413 = vmul.f32 %v332, %v411
    %v414 = vmul.f32 %v333, %v411
    %v415 = vmul.f32 %v334, %v411
    %v416 = vlaneseq
    %v417 = vshrl.u32 %v416, 7
    %v418 = vsub.s32 2, %v417
    %v419 = vrot.slane %v407, %v418
    %v420 = vadd.f32 %v412, %v419
    %v421 = vadd.f32 %v413, %v419
    %v422 = vadd.f32 %v414, %v419
    %v423 = vadd.f32 %v415, %v419
    %v424 = vmax.f32 %v420, 0.0
    %v425 = vmax.f32 %v421, 0.0
    %v426 = vmax.f32 %v422, 0.0
    %v427 = vmax.f32 %v423, 0.0
    %v428 = vpack.c.bf16 %v425, %v424
    %v429 = vpack.c.bf16 %v427, %v426
    %v430 = vld [vmem:[#allocation7] sm:$0xff]
    %v431 = vld [vmem:[#allocation7 + $0x8] sm:$0xf]
    %v432 = vld [vmem:[#allocation7 + $0xc] sm:$0xff]
    %v433 = vld [vmem:[#allocation7 + $0x14] sm:$0xf]
    %v434 = vld [vmem:[#allocation7 + $0x18] sm:$0xff]
    %v435 = vld [vmem:[#allocation7 + $0x20] sm:$0xf]
    %v436 = vld [vmem:[#allocation7 + $0x24] sm:$0xff]
    %v437 = vld [vmem:[#allocation7 + $0x2c] sm:$0xf]
    %v438 = vld [vmem:[#allocation7 + $0x30] sm:$0xff]
    %v439 = vld [vmem:[#allocation7 + $0x38] sm:$0xf]
    %v440 = vld [vmem:[#allocation7 + $0x3c] sm:$0xff]
    %v441 = vld [vmem:[#allocation7 + $0x44] sm:$0xf]
    %v442 = vld [vmem:[#allocation7 + $0x48] sm:$0xff]
    %v443 = vld [vmem:[#allocation7 + $0x50] sm:$0xf]
    %v444 = vld [vmem:[#allocation7 + $0x54] sm:$0xff]
    %v445 = vld [vmem:[#allocation7 + $0x5c] sm:$0xf]
    %v446 = vld [vmem:[#allocation7 + $0x60] sm:$0xff]
    %v447 = vld [vmem:[#allocation7 + $0x68] sm:$0xf]
    %v448 = vld [vmem:[#allocation7 + $0x6c] sm:$0xff]
    %v449 = vld [vmem:[#allocation7 + $0x74] sm:$0xf]
    %v450 = vld [vmem:[#allocation7 + $0x78] sm:$0xff]
    %v451 = vld [vmem:[#allocation7 + $0x80] sm:$0xf]
    %v452 = vld [vmem:[#allocation7 + $0x84] sm:$0xff]
    %v453 = vld [vmem:[#allocation7 + $0x8c] sm:$0xf]
    %v454 = vld [vmem:[#allocation7 + $0x90] sm:$0xff]
    %v455 = vld [vmem:[#allocation7 + $0x98] sm:$0xf]
    %v456 = vld [vmem:[#allocation7 + $0x9c] sm:$0xff]
    %v457 = vld [vmem:[#allocation7 + $0xa4] sm:$0xf]
    %v458 = vld [vmem:[#allocation7 + $0xa8] sm:$0xff]
    %v459 = vld [vmem:[#allocation7 + $0xb0] sm:$0xf]
    %v460 = vld [vmem:[#allocation7 + $0xb4] sm:$0xff]
    %v461 = vld [vmem:[#allocation7 + $0xbc] sm:$0xf]
    %v494 = vunpack.c.l.b16 %v430
    %v495 = vunpack.c.h.b16 %v430
    %v496 = vunpack.c.l.b16 %v431
    %v497 = vunpack.c.l.b16 %v432
    %v498 = vunpack.c.h.b16 %v432
    %v499 = vunpack.c.l.b16 %v433
    %v500 = vunpack.c.l.b16 %v434
    %v501 = vunpack.c.h.b16 %v434
    %v502 = vunpack.c.l.b16 %v435
    %v503 = vunpack.c.l.b16 %v436
    %v504 = vunpack.c.h.b16 %v436
    %v505 = vunpack.c.l.b16 %v437
    %v506 = vunpack.c.l.b16 %v438
    %v507 = vunpack.c.h.b16 %v438
    %v508 = vunpack.c.l.b16 %v439
    %v509 = vunpack.c.l.b16 %v440
    %v510 = vunpack.c.h.b16 %v440
    %v511 = vunpack.c.l.b16 %v441
    %v512 = vunpack.c.l.b16 %v442
    %v513 = vunpack.c.h.b16 %v442
    %v514 = vunpack.c.l.b16 %v443
    %v515 = vunpack.c.l.b16 %v444
    %v516 = vunpack.c.h.b16 %v444
    %v517 = vunpack.c.l.b16 %v445
    %v518 = vunpack.c.l.b16 %v446
    %v519 = vunpack.c.h.b16 %v446
    %v520 = vunpack.c.l.b16 %v447
    %v521 = vunpack.c.l.b16 %v448
    %v522 = vunpack.c.h.b16 %v448
    %v523 = vunpack.c.l.b16 %v449
    %v524 = vunpack.c.l.b16 %v450
    %v525 = vunpack.c.h.b16 %v450
    %v526 = vunpack.c.l.b16 %v451
    %v527 = vunpack.c.l.b16 %v452
    %v528 = vunpack.c.h.b16 %v452
    %v529 = vunpack.c.l.b16 %v453
    %v530 = vunpack.c.l.b16 %v454
    %v531 = vunpack.c.h.b16 %v454
    %v532 = vunpack.c.l.b16 %v455
    %v533 = vunpack.c.l.b16 %v456
    %v534 = vunpack.c.h.b16 %v456
    %v535 = vunpack.c.l.b16 %v457
    %v536 = vunpack.c.l.b16 %v458
    %v537 = vunpack.c.h.b16 %v458
    %v538 = vunpack.c.l.b16 %v459
    %v539 = vunpack.c.l.b16 %v460
    %v540 = vunpack.c.h.b16 %v460
    %v541 = vunpack.c.l.b16 %v461
    %v542 = vpack.c.b16 %v497, %v494
    %v543 = vpack.c.b16 %v498, %v495
    %v544 = vpack.c.b16 %v499, %v496
    %v545 = vpack.c.b16 %v503, %v500
    %v546 = vpack.c.b16 %v504, %v501
    %v547 = vpack.c.b16 %v505, %v502
    %v548 = vpack.c.b16 %v509, %v506
    %v549 = vpack.c.b16 %v510, %v507
    %v550 = vpack.c.b16 %v511, %v508
    %v551 = vpack.c.b16 %v515, %v512
    %v552 = vpack.c.b16 %v516, %v513
    %v553 = vpack.c.b16 %v517, %v514
    %v554 = vpack.c.b16 %v521, %v518
    %v555 = vpack.c.b16 %v522, %v519
    %v556 = vpack.c.b16 %v523, %v520
    %v557 = vpack.c.b16 %v527, %v524
    %v558 = vpack.c.b16 %v528, %v525
    %v559 = vpack.c.b16 %v529, %v526
    %v560 = vpack.c.b16 %v533, %v530
    %v561 = vpack.c.b16 %v534, %v531
    %v562 = vpack.c.b16 %v535, %v532
    %v563 = vpack.c.b16 %v539, %v536
    %v564 = vpack.c.b16 %v540, %v537
    %v565 = vpack.c.b16 %v541, %v538
    %590 = vmatprep.subr.bf16.mxu0 %v543
    %591 = vmatpush1.bf16.msra.mxu0 %v542
    %592 = vmatprep.subr.bf16.mxu0 %v546
    %593 = vmatpush1.bf16.msra.mxu0 %v545
    %594 = vmatprep.subr.bf16.mxu0 %v549
    %595 = vmatpush1.bf16.msra.mxu0 %v548
    %596 = vmatprep.subr.bf16.mxu0 %v552
    %597 = vmatpush1.bf16.msra.mxu0 %v551
    %598 = vmatprep.subr.bf16.mxu0 %v555
    %599 = vmatpush1.bf16.msra.mxu0 %v554
    %600 = vmatprep.subr.bf16.mxu0 %v558
    %601 = vmatpush1.bf16.msra.mxu0 %v557
    %602 = vmatprep.subr.bf16.mxu0 %v561
    %603 = vmatpush1.bf16.msra.mxu0 %v560
    %604 = vmatprep.subr.bf16.mxu0 %v564
    %605 = vmatpush1.bf16.msra.mxu0 %v563
    %606 = vmatprep.subr.bf16.mxu0 0
    %607 = vmatpush1.bf16.msra.mxu0 0
    %608 = vmatprep.subr.bf16.mxu0 0
    %609 = vmatpush1.bf16.msra.mxu0 0
    %610 = vmatprep.subr.bf16.mxu0 0
    %611 = vmatpush1.bf16.msra.mxu0 0
    %612 = vmatprep.subr.bf16.mxu0 0
    %613 = vmatpush1.bf16.msra.mxu0 0
    %614 = vmatprep.subr.bf16.mxu0 0
    %615 = vmatpush1.bf16.msra.mxu0 0
    %616 = vmatprep.subr.bf16.mxu0 0
    %617 = vmatpush1.bf16.msra.mxu0 0
    %618 = vmatprep.subr.bf16.mxu0 0
    %619 = vmatpush1.bf16.msra.mxu0 0
    %620 = vmatprep.subr.bf16.mxu0 0
    %621 = vmatpush1.bf16.msra.mxu0 0
    %622 = vmatprep.mubr.bf16.mxu0 0
    %623 = vmatmul.mubr.bf16.gmra.mrb[0].mxu0 %v428
    %v624 = vpop.f32.mrb[0].mxu0
    %v625 = vadd.f32 0.0, %v624
    %v626 = vpop.f32.mrb[0].mxu0
    %v627 = vadd.f32 0.0, %v626
    %v628 = vpop.f32.mrb[0].mxu0
    %v629 = vadd.f32 0.0, %v628
    %v630 = vpop.f32.mrb[0].mxu0
    %v631 = vadd.f32 0.0, %v630
    %632 = vmatprep.mubr.bf16.mxu0 0
    %633 = vmatmul.mubr.bf16.gmra.mrb[0].mxu0 %v429
    %v634 = vpop.f32.mrb[0].mxu0
    %v635 = vadd.f32 0.0, %v634
    %v636 = vpop.f32.mrb[0].mxu0
    %v637 = vadd.f32 0.0, %v636
    %v638 = vpop.f32.mrb[0].mxu0
    %v639 = vadd.f32 0.0, %v638
    %v640 = vpop.f32.mrb[0].mxu0
    %v641 = vadd.f32 0.0, %v640
    %642 = vdwg.mxu0
    %643 = vmatprep.subr.bf16.mxu0 0
    %644 = vmatpush1.bf16.msra.mxu0 %v544
    %645 = vmatprep.subr.bf16.mxu0 0
    %646 = vmatpush1.bf16.msra.mxu0 %v547
    %647 = vmatprep.subr.bf16.mxu0 0
    %648 = vmatpush1.bf16.msra.mxu0 %v550
    %649 = vmatprep.subr.bf16.mxu0 0
    %650 = vmatpush1.bf16.msra.mxu0 %v553
    %651 = vmatprep.subr.bf16.mxu0 0
    %652 = vmatpush1.bf16.msra.mxu0 %v556
    %653 = vmatprep.subr.bf16.mxu0 0
    %654 = vmatpush1.bf16.msra.mxu0 %v559
    %655 = vmatprep.subr.bf16.mxu0 0
    %656 = vmatpush1.bf16.msra.mxu0 %v562
    %657 = vmatprep.subr.bf16.mxu0 0
    %658 = vmatpush1.bf16.msra.mxu0 %v565
    %659 = vmatprep.subr.bf16.mxu0 0
    %660 = vmatpush1.bf16.msra.mxu0 0
    %661 = vmatprep.subr.bf16.mxu0 0
    %662 = vmatpush1.bf16.msra.mxu0 0
    %663 = vmatprep.subr.bf16.mxu0 0
    %664 = vmatpush1.bf16.msra.mxu0 0
    %665 = vmatprep.subr.bf16.mxu0 0
    %666 = vmatpush1.bf16.msra.mxu0 0
    %667 = vmatprep.subr.bf16.mxu0 0
    %668 = vmatpush1.bf16.msra.mxu0 0
    %669 = vmatprep.subr.bf16.mxu0 0
    %670 = vmatpush1.bf16.msra.mxu0 0
    %671 = vmatprep.subr.bf16.mxu0 0
    %672 = vmatpush1.bf16.msra.mxu0 0
    %673 = vmatprep.subr.bf16.mxu0 0
    %674 = vmatpush1.bf16.msra.mxu0 0
    %675 = vmatprep.mubr.bf16.mxu0 0
    %676 = vmatmul.mubr.bf16.gmra.mrb[0].mxu0 %v428
    %v677 = vpop.f32.mrb[0].mxu0
    %v678 = vadd.f32 0.0, %v677
    %v679 = vpop.f32.mrb[0].mxu0
    %v680 = vpop.f32.mrb[0].mxu0
    %v681 = vadd.f32 0.0, %v680
    %v682 = vpop.f32.mrb[0].mxu0
    %683 = vmatprep.mubr.bf16.mxu0 0
    %684 = vmatmul.mubr.bf16.gmra.mrb[0].mxu0 %v429
    %v685 = vpop.f32.mrb[0].mxu0
    %v686 = vadd.f32 0.0, %v685
    %v687 = vpop.f32.mrb[0].mxu0
    %v688 = vpop.f32.mrb[0].mxu0
    %v689 = vadd.f32 0.0, %v688
    %v690 = vpop.f32.mrb[0].mxu0
    %691 = vdwg.mxu0
    %v692 = vrot.slane %v625, 7
    %v693 = vrot.slane %v629, 7
    %v694 = vrot.slane %v635, 7
    %v695 = vrot.slane %v639, 7
    %v696 = vsel %vm305, %v694, %v695
    %v697 = vsel %vm305, %v693, %v694
    %v698 = vsel %vm305, %v692, %v693
    %v699 = vsel %vm305, %v695, %v692
    %v700 = vsel %vm69, %v699, 0.0
    %v701 = vsel %vm70, %v698, 0.0
    %v702 = vsel %vm71, %v697, 0.0
    %v703 = vsel %vm72, %v696, 0.0
    %v704 = vadd.f32 %v627, %v700
    %v705 = vadd.f32 %v631, %v701
    %v706 = vadd.f32 %v637, %v702
    %v707 = vadd.f32 %v641, %v703
    %v708 = vrot.slane %v678, 1
    %v709 = vrot.slane %v681, 1
    %v710 = vrot.slane %v686, 1
    %v711 = vrot.slane %v689, 1
    %v712 = vsel %vm322, %v710, %v711
    %v713 = vsel %vm322, %v709, %v710
    %v714 = vsel %vm322, %v708, %v709
    %v715 = vsel %vm322, %v711, %v708
    %v716 = vsel %vm73, %v714, 0.0
    %v717 = vsel %vm74, %v713, 0.0
    %v718 = vsel %vm75, %v712, 0.0
    %v719 = vsel %vm76, %v715, 0.0
    %v720 = vadd.f32 %v704, %v716
    %v721 = vadd.f32 %v705, %v717
    %v722 = vadd.f32 %v706, %v718
    %v723 = vadd.f32 %v707, %v719
    %v724 = vadd.f32 %v720, %v721
    %v725 = vadd.f32 %v724, %v722
    %v726 = vadd.f32 %v725, %v723
    %v727 = vrot.slane %v726, 4
    %v728 = vadd.f32 %v726, %v727
    %v729 = vrot.slane %v728, 2
    %v730 = vadd.f32 %v728, %v729
    %v731 = vrot.slane %v730, 1
    %v732 = vadd.f32 %v730, %v731
    %v733 = vmul.f32 %v720, %v720
    %v734 = vmul.f32 %v721, %v721
    %v735 = vmul.f32 %v722, %v722
    %v736 = vmul.f32 %v723, %v723
    %v737 = vadd.f32 %v733, %v734
    %v738 = vadd.f32 %v737, %v735
    %v739 = vadd.f32 %v738, %v736
    %v740 = vrot.slane %v739, 4
    %v741 = vadd.f32 %v739, %v740
    %v742 = vrot.slane %v741, 2
    %v743 = vadd.f32 %v741, %v742
    %v744 = vrot.slane %v743, 1
    %v745 = vadd.f32 %v743, %v744
    %746 = vrot.lane.b32.xlu0 %v732, 64
    %v747 = vpop.permute.xlu0 %746
    %v748 = vadd.f32 %v732, %v747
    %749 = vrot.lane.b32.xlu0 %v745, 64
    %v750 = vpop.permute.xlu0 %749
    %v751 = vadd.f32 %v745, %v750
    %752 = vrot.lane.b32.xlu0 %v748, 32
    %v753 = vpop.permute.xlu0 %752
    %v754 = vadd.f32 %v748, %v753
    %755 = vrot.lane.b32.xlu0 %v751, 32
    %v756 = vpop.permute.xlu0 %755
    %v757 = vadd.f32 %v751, %v756
    %758 = vrot.lane.b32.xlu0 %v754, 16
    %v759 = vpop.permute.xlu0 %758
    %v760 = vadd.f32 %v754, %v759
    %761 = vrot.lane.b32.xlu0 %v757, 16
    %v762 = vpop.permute.xlu0 %761
    %v763 = vadd.f32 %v757, %v762
    %764 = vrot.lane.b32.xlu0 %v760, 8
    %v765 = vpop.permute.xlu0 %764
    %v766 = vadd.f32 %v760, %v765
    %767 = vrot.lane.b32.xlu0 %v763, 8
    %v768 = vpop.permute.xlu0 %767
    %v769 = vadd.f32 %v763, %v768
    %v770 = vmul.f32 %v766, 0.001953125
    %v771 = vmul.f32 %v769, 0.001953125
    %v772 = vmul.f32 %v770, %v770
    %v773 = vsub.f32 %v771, %v772
    %v774 = vmax.f32 %v773, 0.0
    %v775 = vadd.f32 %v774, 1e-05
    %v776 = vrsqrt.pop %v775
    %v778 = vrot.slane %v776, 5
    %v780 = vmul.f32 %v77, %v778
    %v782 = vrot.slane %v780, 3
    %v784 = vmul.f32 %v770, %v782
    %v786 = vrot.slane %v784, 4
    %v788 = vsub.f32 %v77, %v786
    %v789 = vlaneseq
    %v790 = vshrl.u32 %v789, 7
    %v791 = vsub.s32 3, %v790
    %v792 = vrot.slane %v780, %v791
    %v793 = vmul.f32 %v720, %v792
    %v794 = vmul.f32 %v721, %v792
    %v795 = vmul.f32 %v722, %v792
    %v796 = vmul.f32 %v723, %v792
    %v797 = vlaneseq
    %v798 = vshrl.u32 %v797, 7
    %v799 = vsub.s32 4, %v798
    %v800 = vrot.slane %v788, %v799
    %v801 = vadd.f32 %v793, %v800
    %v802 = vadd.f32 %v794, %v800
    %v803 = vadd.f32 %v795, %v800
    %v804 = vadd.f32 %v796, %v800
    %v805 = vadd.f32 %v801, %v339
    %v806 = vadd.f32 %v802, %v340
    %v807 = vadd.f32 %v803, %v341
    %v808 = vadd.f32 %v804, %v342
    %v809 = vmax.f32 %v805, 0.0
    %v810 = vmax.f32 %v806, 0.0
    %v811 = vmax.f32 %v807, 0.0
    %v812 = vmax.f32 %v808, 0.0
    %v813 = vpack.c.bf16 %v810, %v809
    %v814 = vpack.c.bf16 %v812, %v811
    %v817 = vunpack.c.l.b16 %v813
    %v818 = vunpack.c.h.b16 %v813
    %v819 = vunpack.c.l.b16 %v814
    %v820 = vunpack.c.h.b16 %v814
    %v821 = vpack.c.b16 %v817, %v817
    %v822 = vpack.c.b16 %v818, %v818
    %v823 = vpack.c.b16 %v819, %v819
    %v824 = vpack.c.b16 %v820, %v820
    %829 = vst [vmem:[#allocation8] sm:$0xf] %v821
    %830 = vst [vmem:[#allocation8 + $0x4] sm:$0xf] %v822
    %831 = vst [vmem:[#allocation8 + $0x8] sm:$0xf] %v823
    %832 = vst [vmem:[#allocation8 + $0xc] sm:$0xf] %v824
    // Predicated region
    $region30: #{tpu_custom_call.1} parent=1 // pred_check
      _
    $region31: #{tpu_custom_call.1} parent=1 // pred_check_branch
      %834 = sbr.rel (0) target = $region33
    $region32: #{tpu_custom_call.1} parent=1 // pred_region
      %s836 = ssub.s32 256, 256
      %837 = vsyncadd [#allocation4], %s836
      %s838 = sshll.u32 [#allocation8], 4
      %s839 = int_to_ptr.vmem [resolvable:$true] %s838
      %844 = dma.vmem_to_hbm [thread:$0]  %s839, 256, %s4, [#allocation4], 64, 64, 4
    $region33: #{tpu_custom_call.1} parent=1 // pred_fallthru
      _
    // Predicated region
    $region34: #{tpu_custom_call.1} parent=1 // pred_check
      _
    $region35: #{tpu_custom_call.1} parent=1 // pred_check_branch
      %846 = sbr.rel (0) target = $region37
    $region36: #{tpu_custom_call.1} parent=1 // pred_region
      %847 = dma.done [#allocation4], 256
    $region37: #{tpu_custom_call.1} parent=1 // pred_fallthru
      _
    %848 = vsyncpa [#allocation3], 1
    %849 = vsyncpa [#allocation6], 1
    %850 = vsyncpa [#allocation4], 1

</llo_original>
